<compile_context>
chip_gen: v7x
topology: tpu7x:2x2x1
jax: 0.10.0
libtpu: 0.0.40
codegen_flags: <defaults>
</compile_context>

<pallas_src>
import jax
import jax.numpy as jnp
from jax import lax
from jax.experimental import pallas as pl
from jax.experimental.pallas import tpu as pltpu


def _round_up(a: int, b: int) -> int:
    return (a + b - 1) // b * b


def _mlp_kernel(x_ref, wgu_ref, wd_ref, o_ref, acc_ref):
    # x_ref  : (tm, K)        activation tile (constant over j)
    # wgu_ref: (2*ti, K)      [gate tile j ; up tile j], streamed over j
    # wd_ref : (O, ti)        down_proj column tile j, streamed over j
    # o_ref  : (tm, O)        output tile (constant over j -> accumulator)
    # acc_ref: (tm, O) f32    VMEM scratch accumulator
    j = pl.program_id(1)

    @pl.when(j == 0)
    def _init():
        acc_ref[...] = jnp.zeros_like(acc_ref)

    ti = wd_ref.shape[1]

    # (tm, K) · (2*ti, K) contracted on last dims -> (tm, 2*ti); the (out, in)
    # weight layout is consumed directly by the MXU (no transpose copy).
    gu = lax.dot_general(
        x_ref[...], wgu_ref[...],
        dimension_numbers=(((1,), (1,)), ((), ())),
        preferred_element_type=jnp.float32,
    )
    gate = gu[:, :ti]
    up = gu[:, ti:]
    h = gate * jax.nn.sigmoid(gate) * up          # silu(gate) * up, in f32

    # (tm, ti) · (O, ti) contracted on last dims -> (tm, O), accumulate in f32.
    acc_ref[...] += lax.dot_general(
        h.astype(wd_ref.dtype), wd_ref[...],
        dimension_numbers=(((1,), (1,)), ((), ())),
        preferred_element_type=jnp.float32,
    )

    @pl.when(j == pl.num_programs(1) - 1)
    def _store():
        o_ref[...] = acc_ref[...].astype(o_ref.dtype)


def mix_llama_mlp(x, gate_w, up_w, down_w, *, tm=256, ti=512):
    """Fused LLaMA MLP: down( silu(x @ gate.T) * (x @ up.T) ).

    tm: row tile over the flattened token dim. ti: tile over the intermediate
    dim (reduction axis of the down matmul).  Defaults (tm=256, ti=512, bf16
    LLaMA-7B shapes) keep double-buffered tiles well under v7x's 64 MiB VMEM;
    on v6e/v5e larger ti/tm can be passed to reduce weight re-streaming.
    """
    K = x.shape[-1]
    I = gate_w.shape[0]
    O = down_w.shape[0]
    assert gate_w.shape == (I, K)
    assert up_w.shape == (I, K)
    assert down_w.shape == (O, I)

    lead = x.shape[:-1]
    x2d = x.reshape(-1, K)
    M = x2d.shape[0]

    # ---- tile selection: align to (8, 128), pad instead of shrinking tiles ----
    tm = _round_up(max(8, min(int(tm), _round_up(M, 8))), 8)
    Mp = _round_up(M, tm)
    ti = _round_up(max(128, min(int(ti), _round_up(I, 128))), 128)
    Ip = _round_up(I, ti)

    if Mp != M:
        x2d = jnp.pad(x2d, ((0, Mp - M), (0, 0)))
    gw, uw, dw = gate_w, up_w, down_w
    if Ip != I:
        # zero-padded intermediate rows contribute silu(0)*0 = 0 -> exact.
        gw = jnp.pad(gw, ((0, Ip - I), (0, 0)))
        uw = jnp.pad(uw, ((0, Ip - I), (0, 0)))
        dw = jnp.pad(dw, ((0, 0), (0, Ip - I)))

    gm, gj = Mp // tm, Ip // ti

    # Interleave gate/up per intermediate tile so one BlockSpec streams both:
    # rows [j*2*ti, j*2*ti + ti) = gate tile j, next ti rows = up tile j.
    w_gu = jnp.concatenate(
        [gw.reshape(gj, ti, K), uw.reshape(gj, ti, K)], axis=1
    ).reshape(gj * 2 * ti, K)

    itemsize = jnp.dtype(x.dtype).itemsize
    # Rough double-buffered VMEM footprint (inputs + output) + f32 accumulator.
    est_vmem = 2 * (tm * K + 2 * ti * K + O * ti + tm * O) * itemsize + tm * O * 4
    vmem_limit = int(min(100 * 1024 * 1024,
                         max(32 * 1024 * 1024, est_vmem * 3 // 2)))

    cost = pl.CostEstimate(
        flops=2 * Mp * K * (2 * Ip) + 2 * Mp * Ip * O,
        transcendentals=Mp * Ip,
        bytes_accessed=(x2d.size + gm * (w_gu.size + dw.size) + Mp * O) * itemsize,
    )

    out2d = pl.pallas_call(
        _mlp_kernel,
        out_shape=jax.ShapeDtypeStruct((Mp, O), x.dtype),
        grid_spec=pltpu.PrefetchScalarGridSpec(
            num_scalar_prefetch=0,
            grid=(gm, gj),
            in_specs=[
                pl.BlockSpec((tm, K), lambda i, j: (i, 0)),        # activations
                pl.BlockSpec((2 * ti, K), lambda i, j: (j, 0)),    # gate+up tile
                pl.BlockSpec((O, ti), lambda i, j: (0, j)),        # down tile
            ],
            out_specs=pl.BlockSpec((tm, O), lambda i, j: (i, 0)),
            scratch_shapes=[pltpu.VMEM((tm, O), jnp.float32)],
        ),
        compiler_params=pltpu.CompilerParams(
            dimension_semantics=("parallel", "arbitrary"),
            vmem_limit_bytes=vmem_limit,
        ),
        cost_estimate=cost,
    )(x2d, w_gu, dw)

    if Mp != M:
        out2d = out2d[:M]
    return out2d.reshape(lead + (O,))


def _reference(x, gate_w, up_w, down_w):
    x2d = x.reshape(-1, x.shape[-1])
    gate = x2d @ gate_w.T
    up = x2d @ up_w.T
    h = jax.nn.silu(gate) * up
    out = h @ down_w.T
    return out.reshape(x.shape[:-1] + (down_w.shape[0],))


if __name__ == "__main__":
    # Small, deterministic shapes consistent with the module.
    batch, seq = 2, 8
    in_features = 256       # gate_proj.in_features
    intermediate = 512      # gate_proj.out_features
    out_features = 256      # down_proj.out_features

    key = jax.random.PRNGKey(0)
    kx, kg, ku, kd = jax.random.split(key, 4)
    x = jax.random.normal(kx, (batch, seq, in_features), dtype=jnp.float32)
    gate_w = jax.random.normal(kg, (intermediate, in_features), jnp.float32) * 0.05
    up_w = jax.random.normal(ku, (intermediate, in_features), jnp.float32) * 0.05
    down_w = jax.random.normal(kd, (out_features, intermediate), jnp.float32) * 0.05

    # Small tiles so the demo exercises both grid axes and the accumulator path
    # (grid = (2, 4)).  Production callers use the larger defaults.
    out = mix_llama_mlp(x, gate_w, up_w, down_w, tm=8, ti=128)
    out = jax.block_until_ready(out)

    ref = _reference(x, gate_w, up_w, down_w)
    assert out.shape == (batch, seq, out_features)
    assert jnp.allclose(out, ref, atol=2e-3, rtol=2e-3), "mismatch vs reference"

    print("KERNEL_OK")
</pallas_src>

<mosaic_0001>
module attributes {stable_mosaic.version = 11 : i64} {
  func.func @_mlp_kernel(%arg0: i32, %arg1: i32, %arg2: memref<8x256xf32, #tpu.memory_space<vmem>>, %arg3: memref<256x256xf32, #tpu.memory_space<vmem>>, %arg4: memref<256x128xf32, #tpu.memory_space<vmem>>, %arg5: memref<8x256xf32, #tpu.memory_space<vmem>>, %arg6: memref<8x256xf32, #tpu.memory_space<vmem>>) attributes {dimension_semantics = [#tpu.dimension_semantics<parallel>, #tpu.dimension_semantics<arbitrary>], iteration_bounds = array<i64: 2, 4>, scalar_prefetch = 0 : i64, scratch_operands = 1 : i64, tpu.core_type = #tpu.core_type<tc>, window_params = [{transform_indices = @transform_0, window_bounds = array<i64: 8, 256>}, {transform_indices = @transform_1, window_bounds = array<i64: 256, 256>}, {transform_indices = @transform_2, window_bounds = array<i64: 256, 128>}, {transform_indices = @transform_3, window_bounds = array<i64: 8, 256>}]} {
    %c0_i32 = arith.constant 0 : i32
    %0 = arith.cmpi eq, %arg1, %c0_i32 : i32
    %1 = arith.extui %0 : i1 to i32
    %c0_i32_0 = arith.constant 0 : i32
    %2 = arith.cmpi ne, %1, %c0_i32_0 : i32
    scf.if %2 {
      %cst_13 = arith.constant 0.000000e+00 : f32
      %23 = vector.broadcast %cst_13 : f32 to vector<8x256xf32>
      %c0_14 = arith.constant 0 : index
      %c0_15 = arith.constant 0 : index
      %24 = vector.load %arg6[%c0_14, %c0_15] : memref<8x256xf32, #tpu.memory_space<vmem>>, vector<8x256xf32>
      tpu.vector_store %arg6[%c0_14, %c0_15], %23 {strides = array<i32>} : memref<8x256xf32, #tpu.memory_space<vmem>>, vector<8x256xf32>,
    } else {
    }
    %c0 = arith.constant 0 : index
    %c0_1 = arith.constant 0 : index
    %3 = vector.load %arg2[%c0, %c0_1] : memref<8x256xf32, #tpu.memory_space<vmem>>, vector<8x256xf32>
    %c0_2 = arith.constant 0 : index
    %c0_3 = arith.constant 0 : index
    %4 = vector.load %arg3[%c0_2, %c0_3] : memref<256x256xf32, #tpu.memory_space<vmem>>, vector<256x256xf32>
    %cst = arith.constant dense<0.000000e+00> : vector<8x256xf32>
    %5 = tpu.matmul %3, %4, %cst {dimension_numbers = #tpu.dot_dimension_numbers<[1], [1], [0], [0], [0, 0, 1, 0], [], []>} : vector<8x256xf32>, vector<256x256xf32>, vector<8x256xf32> -> vector<8x256xf32>
    %6 = vector.extract_strided_slice %5 {offsets = [0, 0], sizes = [8, 128], strides = [1, 1]} : vector<8x256xf32> to vector<8x128xf32>
    %7 = vector.extract_strided_slice %5 {offsets = [0, 128], sizes = [8, 128], strides = [1, 1]} : vector<8x256xf32> to vector<8x128xf32>
    %8 = arith.negf %6 : vector<8x128xf32>
    %9 = math.exp %8 : vector<8x128xf32>
    %cst_4 = arith.constant 1.000000e+00 : f32
    %10 = vector.broadcast %cst_4 : f32 to vector<8x128xf32>
    %11 = arith.addf %10, %9 : vector<8x128xf32>
    %12 = arith.divf %10, %11 : vector<8x128xf32>
    %13 = arith.mulf %6, %12 : vector<8x128xf32>
    %14 = arith.mulf %13, %7 : vector<8x128xf32>
    %c0_5 = arith.constant 0 : index
    %c0_6 = arith.constant 0 : index
    %15 = vector.load %arg6[%c0_5, %c0_6] : memref<8x256xf32, #tpu.memory_space<vmem>>, vector<8x256xf32>
    %c0_7 = arith.constant 0 : index
    %c0_8 = arith.constant 0 : index
    %16 = vector.load %arg4[%c0_7, %c0_8] : memref<256x128xf32, #tpu.memory_space<vmem>>, vector<256x128xf32>
    %cst_9 = arith.constant dense<0.000000e+00> : vector<8x256xf32>
    %17 = tpu.matmul %14, %16, %cst_9 {dimension_numbers = #tpu.dot_dimension_numbers<[1], [1], [0], [0], [0, 0, 1, 0], [], []>} : vector<8x128xf32>, vector<256x128xf32>, vector<8x256xf32> -> vector<8x256xf32>
    %18 = arith.addf %15, %17 : vector<8x256xf32>
    %c0_10 = arith.constant 0 : index
    %c0_11 = arith.constant 0 : index
    %19 = vector.load %arg6[%c0_10, %c0_11] : memref<8x256xf32, #tpu.memory_space<vmem>>, vector<8x256xf32>
    tpu.vector_store %arg6[%c0_10, %c0_11], %18 {strides = array<i32>} : memref<8x256xf32, #tpu.memory_space<vmem>>, vector<8x256xf32>,
    %c3_i32 = arith.constant 3 : i32
    %20 = arith.cmpi eq, %arg1, %c3_i32 : i32
    %21 = arith.extui %20 : i1 to i32
    %c0_i32_12 = arith.constant 0 : i32
    %22 = arith.cmpi ne, %21, %c0_i32_12 : i32
    scf.if %22 {
      %c0_13 = arith.constant 0 : index
      %c0_14 = arith.constant 0 : index
      %23 = vector.load %arg6[%c0_13, %c0_14] : memref<8x256xf32, #tpu.memory_space<vmem>>, vector<8x256xf32>
      %c0_15 = arith.constant 0 : index
      %c0_16 = arith.constant 0 : index
      %24 = vector.load %arg5[%c0_15, %c0_16] : memref<8x256xf32, #tpu.memory_space<vmem>>, vector<8x256xf32>
      tpu.vector_store %arg5[%c0_15, %c0_16], %23 {strides = array<i32>} : memref<8x256xf32, #tpu.memory_space<vmem>>, vector<8x256xf32>,
    } else {
    }
    return
  }
  func.func @transform_0(%arg0: i32, %arg1: i32) -> (i32, i32) {
    %c0_i32 = arith.constant 0 : i32
    %c0_i32_0 = arith.constant 0 : i32
    return %arg0, %c0_i32 : i32, i32
  }
  func.func @transform_1(%arg0: i32, %arg1: i32) -> (i32, i32) {
    %c0_i32 = arith.constant 0 : i32
    %c0_i32_0 = arith.constant 0 : i32
    return %arg1, %c0_i32 : i32, i32
  }
  func.func @transform_2(%arg0: i32, %arg1: i32) -> (i32, i32) {
    %c0_i32 = arith.constant 0 : i32
    %c0_i32_0 = arith.constant 0 : i32
    return %c0_i32, %arg1 : i32, i32
  }
  func.func @transform_3(%arg0: i32, %arg1: i32) -> (i32, i32) {
    %c0_i32 = arith.constant 0 : i32
    %c0_i32_0 = arith.constant 0 : i32
    return %arg0, %c0_i32 : i32, i32
  }
}

</mosaic_0001>

<llo_original>
// kernel: tpu_custom_call.1
$region0: #{tpu_custom_call.1}
  #allocation0 [shape = 'u32[]', space=smem, size = 0x4, offset = 0x4, fixed_abs, tag = 'smem constant byte address 0x4 - core index']
  #allocation1 [shape = 'u32[144,128]{1,0:T(1,128)}', space=vmem, size = 0x12000, scoped, tag = 'internal scratch']
  #allocation2 [shape = 'f32[8,256]{1,0:T(8,128)}', space=vmem, size = 0x2000, scoped, tag = 'scratch operand']
  %s0 = inlined_call_operand.hbm [shape: f32[16,256], index: 0, kind: input, shape index: {}]
  %s1 = inlined_call_operand.hbm [shape: f32[1024,256], index: 1, kind: input, shape index: {}]
  %s2 = inlined_call_operand.hbm [shape: f32[256,512], index: 2, kind: input, shape index: {}]
  %s3 = inlined_call_operand.hbm [shape: f32[16,256], index: 3, kind: output, shape index: {}]
  %s4 = sld [smem:[#allocation0]]
  $region65: #{tpu_custom_call.1} parent=0
    _
  %s6 = ssub.s32 1, %s4
  %s7 = scalar_select 0, %s6, %s4
  $region1: #{tpu_custom_call.1} parent=0
    #allocation3 [shape = 'u8[16384]{0}', space=vmem, size = 0x4000, scoped, tag = 'input window, operand 0']
    #allocation4 [shape = 's32[2]{0}', space=sflag, size = 0x8, scoped, tag = 'scoped memory for tpu_custom_call.1']
    #allocation5 [shape = 's32[2]{0}', space=sflag, size = 0x8, scoped, tag = 'scoped memory for tpu_custom_call.1']
    #allocation6 [shape = 'u8[524288]{0}', space=vmem, size = 0x80000, scoped, tag = 'input window, operand 1']
    #allocation7 [shape = 's32[2]{0}', space=sflag, size = 0x8, scoped, tag = 'scoped memory for tpu_custom_call.1']
    #allocation8 [shape = 'u8[262144]{0}', space=vmem, size = 0x40000, scoped, tag = 'input window, operand 2']
    #allocation9 [shape = 'u8[16384]{0}', space=vmem, size = 0x4000, scoped, tag = 'output window, operand 0']
    %8 = vsyncpa [#allocation4], 0
    %s9 = scalar_lea.sflag [#allocation4], 1
    %10 = vsyncpa %s9, 0
    %11 = vsyncpa [#allocation7], 0
    %s12 = scalar_lea.sflag [#allocation7], 1
    %13 = vsyncpa %s12, 0
    %14 = vsyncpa [#allocation5], 0
    %s15 = scalar_lea.sflag [#allocation5], 1
    %16 = vsyncpa %s15, 0
    loop: start=0, step=1, limit=10
    $region2: #{tpu_custom_call.1} parent=1 // loop_pre_header
      _
    $region3: #{tpu_custom_call.1} parent=1 // loop_header
      %s18 = sphi 0, %s22
      %p19 = scmp.ge.s32.totalorder %s18, 10
      %s25 = sphi 0, %s37
      %s26 = sphi 0, %s33
      %s27 = sphi 0, %s25
      %s28 = sphi 0, %s26
      %s29 = sphi 0, %s27
      %s30 = sphi 0, %s28
      %s40 = sphi 0, %s42
      %s43 = sphi 0, %s40
      %s44 = sphi 0, %s43
      %s60 = sphi 0, %s44
      %s66 = sphi 0, %s68
      %s69 = sphi 0, %s66
      %s70 = sphi 0, %s69
      %s86 = sphi 0, %s70
      %s92 = sphi 0, %s94
      %s95 = sphi 0, %s92
      %s96 = sphi 0, %s95
      %s112 = sphi 0, %s96
      %s118 = sphi 0, %s120
      %s121 = sphi 0, %s118
      %s122 = sphi 0, %s121
      %s138 = sphi 0, %s122
    $region4: #{tpu_custom_call.1} parent=1 // loop_header_branch
      %21 = sbr.rel (%p19) target = $region8
    $region5: #{tpu_custom_call.1} parent=1 // loop_body
      %s23 = ssub.s32 %s18, 1
      %s24 = ssub.s32 %s18, 2
      %s31 = sadd.s32 1, %s26
      %p32 = scmp.ge.s32.totalorder %s31, 4
      %s33 = scalar_select %p32, 0, %s31
      %s34 = sadd.s32 1, %s25
      %s35 = scalar_select %p32, %s34, %s25
      %p36 = scmp.ge.s32.totalorder %s35, 2
      %s37 = scalar_select %p36, 0, %s35
      %s38 = ssub.s32 %s25, %s37
      %p39 = scmp.eq.s32.totalorder %s38, 0
      %s41 = sadd.s32 %s40, 1
      %s42 = scalar_select %p39, %s40, %s41
      %p45 = pneg %p39
      %p46 = scmp.eq.s32.totalorder %s18, 7
      %p47 = por %p45, %p46
      %p48 = scmp.ne.s32.totalorder %s40, %s43
      %p49 = scmp.eq.s32.totalorder %s18, 0
      %p50 = por %p48, %p49
      %p51 = scmp.ne.s32.totalorder %s40, %s43
      %p52 = scmp.eq.s32.totalorder %s23, 7
      %p53 = por %p51, %p52
      %p54 = scmp.ne.s32.totalorder %s43, %s44
      %p55 = scmp.eq.s32.totalorder %s23, 0
      %p56 = por %p54, %p55
      %p57 = scmp.ne.s32.totalorder %s43, %s44
      %p58 = scmp.eq.s32.totalorder %s24, 7
      %p59 = por %p57, %p58
      %p61 = scmp.ne.s32.totalorder %s44, %s60
      %p62 = scmp.eq.s32.totalorder %s24, 0
      %p63 = por %p61, %p62
      %s64 = ssub.s32 %s26, %s33
      %p65 = scmp.eq.s32.totalorder %s64, 0
      %s67 = sadd.s32 %s66, 1
      %s68 = scalar_select %p65, %s66, %s67
      %p71 = pneg %p65
      %p72 = scmp.eq.s32.totalorder %s18, 7
      %p73 = por %p71, %p72
      %p74 = scmp.ne.s32.totalorder %s66, %s69
      %p75 = scmp.eq.s32.totalorder %s18, 0
      %p76 = por %p74, %p75
      %p77 = scmp.ne.s32.totalorder %s66, %s69
      %p78 = scmp.eq.s32.totalorder %s23, 7
      %p79 = por %p77, %p78
      %p80 = scmp.ne.s32.totalorder %s69, %s70
      %p81 = scmp.eq.s32.totalorder %s23, 0
      %p82 = por %p80, %p81
      %p83 = scmp.ne.s32.totalorder %s69, %s70
      %p84 = scmp.eq.s32.totalorder %s24, 7
      %p85 = por %p83, %p84
      %p87 = scmp.ne.s32.totalorder %s70, %s86
      %p88 = scmp.eq.s32.totalorder %s24, 0
      %p89 = por %p87, %p88
      %s90 = ssub.s32 %s26, %s33
      %p91 = scmp.eq.s32.totalorder %s90, 0
      %s93 = sadd.s32 %s92, 1
      %s94 = scalar_select %p91, %s92, %s93
      %p97 = pneg %p91
      %p98 = scmp.eq.s32.totalorder %s18, 7
      %p99 = por %p97, %p98
      %p100 = scmp.ne.s32.totalorder %s92, %s95
      %p101 = scmp.eq.s32.totalorder %s18, 0
      %p102 = por %p100, %p101
      %p103 = scmp.ne.s32.totalorder %s92, %s95
      %p104 = scmp.eq.s32.totalorder %s23, 7
      %p105 = por %p103, %p104
      %p106 = scmp.ne.s32.totalorder %s95, %s96
      %p107 = scmp.eq.s32.totalorder %s23, 0
      %p108 = por %p106, %p107
      %p109 = scmp.ne.s32.totalorder %s95, %s96
      %p110 = scmp.eq.s32.totalorder %s24, 7
      %p111 = por %p109, %p110
      %p113 = scmp.ne.s32.totalorder %s96, %s112
      %p114 = scmp.eq.s32.totalorder %s24, 0
      %p115 = por %p113, %p114
      %s116 = ssub.s32 %s25, %s37
      %p117 = scmp.eq.s32.totalorder %s116, 0
      %s119 = sadd.s32 %s118, 1
      %s120 = scalar_select %p117, %s118, %s119
      %p123 = pneg %p117
      %p124 = scmp.eq.s32.totalorder %s18, 7
      %p125 = por %p123, %p124
      %p126 = scmp.ne.s32.totalorder %s118, %s121
      %p127 = scmp.eq.s32.totalorder %s18, 0
      %p128 = por %p126, %p127
      %p129 = scmp.ne.s32.totalorder %s118, %s121
      %p130 = scmp.eq.s32.totalorder %s23, 7
      %p131 = por %p129, %p130
      %p132 = scmp.ne.s32.totalorder %s121, %s122
      %p133 = scmp.eq.s32.totalorder %s23, 0
      %p134 = por %p132, %p133
      %p135 = scmp.ne.s32.totalorder %s121, %s122
      %p136 = scmp.eq.s32.totalorder %s24, 7
      %p137 = por %p135, %p136
      %p139 = scmp.ne.s32.totalorder %s122, %s138
      %p140 = scmp.eq.s32.totalorder %s24, 0
      %p141 = por %p139, %p140
      %p142 = scmp.le.s32.totalorder 1, %s18
      %p143 = scmp.lt.s32.totalorder %s18, 9
      %p144 = pnand %p142, %p143
      %p145 = pneg %p144
      // Predicated region
      $region9: #{tpu_custom_call.1} parent=5 // pred_check
        _
      $region10: #{tpu_custom_call.1} parent=5 // pred_check_branch
        %147 = sbr.rel (%p144) target = $region12
      $region11: #{tpu_custom_call.1} parent=5 // pred_region
        %s148 = ssub.s32 %s18, 1
      $region12: #{tpu_custom_call.1} parent=5 // pred_fallthru
        _
      %p149 = scmp.lt.s32.totalorder %s18, 8
      // Predicated region
      $region13: #{tpu_custom_call.1} parent=5 // pred_check
        %p150 = pneg %p149
      $region14: #{tpu_custom_call.1} parent=5 // pred_check_branch
        %152 = sbr.rel (%p150) target = $region16
      $region15: #{tpu_custom_call.1} parent=5 // pred_region
        // Predicated region
        $region17: #{tpu_custom_call.1} parent=15 // pred_check
          %p153 = pneg %p50
        $region18: #{tpu_custom_call.1} parent=15 // pred_check_branch
          %155 = sbr.rel (%p153) target = $region20
        $region19: #{tpu_custom_call.1} parent=15 // pred_region
          %s156 = sand.u32 %s40, 1
          %s157 = scalar_lea.sflag [#allocation4], %s156
          %s158 = sand.u32 %s40, 1
          %s159 = smul.addr %s158, 16
          %s160 = scalar_lea.vmem [#allocation3], %s159
          %s162 = ssub.s32 256, 256
          %163 = vsyncadd %s157, %s162
          %s164 = smul.addr %s25, 2
          %s165 = smul.addr %s164, 128
          %s166 = scalar_lea.hbm %s0, %s165
          %s168 = sshll.u32 %s160, 4
          %s169 = int_to_ptr.vmem [resolvable:$true] %s168
          %171 = dma.hbm_to_vmem [thread:$0]  %s166, 256, %s169, %s157
        $region20: #{tpu_custom_call.1} parent=15 // pred_fallthru
          _
        // Predicated region
        $region21: #{tpu_custom_call.1} parent=15 // pred_check
          %p172 = pneg %p76
        $region22: #{tpu_custom_call.1} parent=15 // pred_check_branch
          %174 = sbr.rel (%p172) target = $region24
        $region23: #{tpu_custom_call.1} parent=15 // pred_region
          %s175 = sand.u32 %s18, 1
          %s176 = scalar_lea.sflag [#allocation7], %s175
          %s177 = sand.u32 %s66, 1
          %s178 = smul.addr %s177, 512
          %s179 = scalar_lea.vmem [#allocation6], %s178
          %s180 = smul.u32 32, %s26
          %s182 = ssub.s32 8192, 8192
          %183 = vsyncadd %s176, %s182
          %s184 = smul.addr %s180, 2
          %s185 = smul.addr %s184, 128
          %s186 = scalar_lea.hbm %s1, %s185
          %s187 = sshll.u32 %s179, 4
          %s188 = int_to_ptr.vmem [resolvable:$true] %s187
          %193 = dma.hbm_to_vmem [thread:$0]  %s186, 8192, %s188, %s176, 256, 256, 16
        $region24: #{tpu_custom_call.1} parent=15 // pred_fallthru
          _
        // Predicated region
        $region25: #{tpu_custom_call.1} parent=15 // pred_check
          %p194 = pneg %p102
        $region26: #{tpu_custom_call.1} parent=15 // pred_check_branch
          %196 = sbr.rel (%p194) target = $region28
        $region27: #{tpu_custom_call.1} parent=15 // pred_region
          %s197 = sand.u32 %s18, 1
          %s198 = scalar_lea.sflag [#allocation7], %s197
          %s199 = sand.u32 %s92, 1
          %s200 = smul.addr %s199, 256
          %s201 = scalar_lea.vmem [#allocation8], %s200
          %s203 = ssub.s32 4096, 4096
          %204 = vsyncadd %s198, %s203
          %s205 = smul.addr %s26, 128
          %s206 = scalar_lea.hbm %s2, %s205
          %s207 = sshll.u32 %s201, 4
          %s208 = int_to_ptr.vmem [resolvable:$true] %s207
          %213 = dma.hbm_to_vmem [thread:$0]  %s206, 4096, %s208, %s198, 512, 128, 8
        $region28: #{tpu_custom_call.1} parent=15 // pred_fallthru
          _
      $region16: #{tpu_custom_call.1} parent=5 // pred_fallthru
        _
      %p214 = scmp.le.s32.totalorder 1, %s18
      %p215 = scmp.lt.s32.totalorder %s18, 9
      %p216 = pnand %p214, %p215
      %p217 = pneg %p216
      // Predicated region
      $region29: #{tpu_custom_call.1} parent=5 // pred_check
        _
      $region30: #{tpu_custom_call.1} parent=5 // pred_check_branch
        %219 = sbr.rel (%p216) target = $region32
      $region31: #{tpu_custom_call.1} parent=5 // pred_region
        %s220 = ssub.s32 %s18, 1
        %s221 = sand.u32 %s43, 1
        %s222 = scalar_lea.sflag [#allocation4], %s221
        %s223 = sand.u32 %s43, 1
        %s224 = smul.addr %s223, 16
        %s225 = scalar_lea.vmem [#allocation3], %s224
        // Predicated region
        $region33: #{tpu_custom_call.1} parent=31 // pred_check
          %p226 = pneg %p56
        $region34: #{tpu_custom_call.1} parent=31 // pred_check_branch
          %228 = sbr.rel (%p226) target = $region36
        $region35: #{tpu_custom_call.1} parent=31 // pred_region
          %229 = dma.done %s222, 256
        $region36: #{tpu_custom_call.1} parent=31 // pred_fallthru
          _
        %s230 = sand.u32 %s23, 1
        %s231 = scalar_lea.sflag [#allocation7], %s230
        %s232 = sand.u32 %s69, 1
        %s233 = smul.addr %s232, 512
        %s234 = scalar_lea.vmem [#allocation6], %s233
        // Predicated region
        $region37: #{tpu_custom_call.1} parent=31 // pred_check
          %p235 = pneg %p82
        $region38: #{tpu_custom_call.1} parent=31 // pred_check_branch
          %237 = sbr.rel (%p235) target = $region40
        $region39: #{tpu_custom_call.1} parent=31 // pred_region
          %238 = dma.done %s231, 8192
        $region40: #{tpu_custom_call.1} parent=31 // pred_fallthru
          _
        %s239 = sand.u32 %s23, 1
        %s240 = scalar_lea.sflag [#allocation7], %s239
        %s241 = sand.u32 %s95, 1
        %s242 = smul.addr %s241, 256
        %s243 = scalar_lea.vmem [#allocation8], %s242
        // Predicated region
        $region41: #{tpu_custom_call.1} parent=31 // pred_check
          %p244 = pneg %p108
        $region42: #{tpu_custom_call.1} parent=31 // pred_check_branch
          %246 = sbr.rel (%p244) target = $region44
        $region43: #{tpu_custom_call.1} parent=31 // pred_region
          %247 = dma.done %s240, 4096
        $region44: #{tpu_custom_call.1} parent=31 // pred_fallthru
          _
        %s248 = sand.u32 %s43, 1
        %s249 = scalar_lea.sflag [#allocation4], %s248
        %s250 = sand.u32 %s43, 1
        %s251 = smul.addr %s250, 16
        %s252 = scalar_lea.vmem [#allocation3], %s251
        %p253 = pneg %p56
        %p254 = pneg %p53
        %s255 = sand.u32 %s23, 1
        %s256 = scalar_lea.sflag [#allocation7], %s255
        %s257 = sand.u32 %s69, 1
        %s258 = smul.addr %s257, 512
        %s259 = scalar_lea.vmem [#allocation6], %s258
        %p260 = pneg %p82
        %p261 = pneg %p79
        %s262 = sand.u32 %s23, 1
        %s263 = scalar_lea.sflag [#allocation7], %s262
        %s264 = sand.u32 %s95, 1
        %s265 = smul.addr %s264, 256
        %s266 = scalar_lea.vmem [#allocation8], %s265
        %p267 = pneg %p108
        %p268 = pneg %p105
        %p269 = pneg %p134
        %p270 = pneg %p131
        %s271 = sand.u32 %s121, 1
        %s272 = scalar_lea.sflag [#allocation5], %s271
        %s273 = sand.u32 %s121, 1
        %s274 = smul.addr %s273, 16
        %s275 = scalar_lea.vmem [#allocation9], %s274
        %s276 = smul.u32 32, %s28
        %p277 = scmp.eq.s32.totalorder %s28, 0
        // Predicated region
        $region45: #{tpu_custom_call.1} parent=31 // pred_check
          %p278 = pneg %p277
        $region46: #{tpu_custom_call.1} parent=31 // pred_check_branch
          %280 = sbr.rel (%p278) target = $region48
        $region47: #{tpu_custom_call.1} parent=31 // pred_region
          %281 = vst [vmem:[#allocation2] sm:$0xff] 0.0
          %282 = vst [vmem:[#allocation2 + $0x8] sm:$0xff] 0.0
        $region48: #{tpu_custom_call.1} parent=31 // pred_fallthru
          _
        %v283 = vld [vmem:[%s225] sm:$0xff]
        %v284 = vld [vmem:[%s225 + $0x8] sm:$0xff]
        %v285 = vld [vmem:[%s234] sm:$0xff]
        %v286 = vld [vmem:[%s234 + $0x8] sm:$0xff]
        %v287 = vld [vmem:[%s234 + $0x10] sm:$0xff]
        %v288 = vld [vmem:[%s234 + $0x18] sm:$0xff]
        %v289 = vld [vmem:[%s234 + $0x20] sm:$0xff]
        %v290 = vld [vmem:[%s234 + $0x28] sm:$0xff]
        %v291 = vld [vmem:[%s234 + $0x30] sm:$0xff]
        %v292 = vld [vmem:[%s234 + $0x38] sm:$0xff]
        %v293 = vld [vmem:[%s234 + $0x40] sm:$0xff]
        %v294 = vld [vmem:[%s234 + $0x48] sm:$0xff]
        %v295 = vld [vmem:[%s234 + $0x50] sm:$0xff]
        %v296 = vld [vmem:[%s234 + $0x58] sm:$0xff]
        %v297 = vld [vmem:[%s234 + $0x60] sm:$0xff]
        %v298 = vld [vmem:[%s234 + $0x68] sm:$0xff]
        %v299 = vld [vmem:[%s234 + $0x70] sm:$0xff]
        %v300 = vld [vmem:[%s234 + $0x78] sm:$0xff]
        %v301 = vld [vmem:[%s234 + $0x80] sm:$0xff]
        %v302 = vld [vmem:[%s234 + $0x88] sm:$0xff]
        %v303 = vld [vmem:[%s234 + $0x90] sm:$0xff]
        %v304 = vld [vmem:[%s234 + $0x98] sm:$0xff]
        %v305 = vld [vmem:[%s234 + $0xa0] sm:$0xff]
        %v306 = vld [vmem:[%s234 + $0xa8] sm:$0xff]
        %v307 = vld [vmem:[%s234 + $0xb0] sm:$0xff]
        %v308 = vld [vmem:[%s234 + $0xb8] sm:$0xff]
        %v309 = vld [vmem:[%s234 + $0xc0] sm:$0xff]
        %v310 = vld [vmem:[%s234 + $0xc8] sm:$0xff]
        %v311 = vld [vmem:[%s234 + $0xd0] sm:$0xff]
        %v312 = vld [vmem:[%s234 + $0xd8] sm:$0xff]
        %v313 = vld [vmem:[%s234 + $0xe0] sm:$0xff]
        %v314 = vld [vmem:[%s234 + $0xe8] sm:$0xff]
        %v315 = vld [vmem:[%s234 + $0xf0] sm:$0xff]
        %v316 = vld [vmem:[%s234 + $0xf8] sm:$0xff]
        %v317 = vld [vmem:[%s234 + $0x100] sm:$0xff]
        %v318 = vld [vmem:[%s234 + $0x108] sm:$0xff]
        %v319 = vld [vmem:[%s234 + $0x110] sm:$0xff]
        %v320 = vld [vmem:[%s234 + $0x118] sm:$0xff]
        %v321 = vld [vmem:[%s234 + $0x120] sm:$0xff]
        %v322 = vld [vmem:[%s234 + $0x128] sm:$0xff]
        %v323 = vld [vmem:[%s234 + $0x130] sm:$0xff]
        %v324 = vld [vmem:[%s234 + $0x138] sm:$0xff]
        %v325 = vld [vmem:[%s234 + $0x140] sm:$0xff]
        %v326 = vld [vmem:[%s234 + $0x148] sm:$0xff]
        %v327 = vld [vmem:[%s234 + $0x150] sm:$0xff]
        %v328 = vld [vmem:[%s234 + $0x158] sm:$0xff]
        %v329 = vld [vmem:[%s234 + $0x160] sm:$0xff]
        %v330 = vld [vmem:[%s234 + $0x168] sm:$0xff]
        %v331 = vld [vmem:[%s234 + $0x170] sm:$0xff]
        %v332 = vld [vmem:[%s234 + $0x178] sm:$0xff]
        %v333 = vld [vmem:[%s234 + $0x180] sm:$0xff]
        %v334 = vld [vmem:[%s234 + $0x188] sm:$0xff]
        %v335 = vld [vmem:[%s234 + $0x190] sm:$0xff]
        %v336 = vld [vmem:[%s234 + $0x198] sm:$0xff]
        %v337 = vld [vmem:[%s234 + $0x1a0] sm:$0xff]
        %v338 = vld [vmem:[%s234 + $0x1a8] sm:$0xff]
        %v339 = vld [vmem:[%s234 + $0x1b0] sm:$0xff]
        %v340 = vld [vmem:[%s234 + $0x1b8] sm:$0xff]
        %v341 = vld [vmem:[%s234 + $0x1c0] sm:$0xff]
        %v342 = vld [vmem:[%s234 + $0x1c8] sm:$0xff]
        %v343 = vld [vmem:[%s234 + $0x1d0] sm:$0xff]
        %v344 = vld [vmem:[%s234 + $0x1d8] sm:$0xff]
        %v345 = vld [vmem:[%s234 + $0x1e0] sm:$0xff]
        %v346 = vld [vmem:[%s234 + $0x1e8] sm:$0xff]
        %v347 = vld [vmem:[%s234 + $0x1f0] sm:$0xff]
        %v348 = vld [vmem:[%s234 + $0x1f8] sm:$0xff]
        %349 = vmatprep.subr.mxu0 %v286
        %350 = vmatpush1.xpose.msra.mxu0 %v285
        %351 = vmatprep.subr.mxu0 %v288
        %352 = vmatpush1.xpose.msra.mxu0 %v287
        %353 = vmatprep.subr.mxu0 %v290
        %354 = vmatpush1.xpose.msra.mxu0 %v289
        %355 = vmatprep.subr.mxu0 %v292
        %356 = vmatpush1.xpose.msra.mxu0 %v291
        %357 = vmatprep.subr.mxu0 %v294
        %358 = vmatpush1.xpose.msra.mxu0 %v293
        %359 = vmatprep.subr.mxu0 %v296
        %360 = vmatpush1.xpose.msra.mxu0 %v295
        %361 = vmatprep.subr.mxu0 %v298
        %362 = vmatpush1.xpose.msra.mxu0 %v297
        %363 = vmatprep.subr.mxu0 %v300
        %364 = vmatpush1.xpose.msra.mxu0 %v299
        %365 = vmatprep.subr.mxu0 %v302
        %366 = vmatpush1.xpose.msra.mxu0 %v301
        %367 = vmatprep.subr.mxu0 %v304
        %368 = vmatpush1.xpose.msra.mxu0 %v303
        %369 = vmatprep.subr.mxu0 %v306
        %370 = vmatpush1.xpose.msra.mxu0 %v305
        %371 = vmatprep.subr.mxu0 %v308
        %372 = vmatpush1.xpose.msra.mxu0 %v307
        %373 = vmatprep.subr.mxu0 %v310
        %374 = vmatpush1.xpose.msra.mxu0 %v309
        %375 = vmatprep.subr.mxu0 %v312
        %376 = vmatpush1.xpose.msra.mxu0 %v311
        %377 = vmatprep.subr.mxu0 %v314
        %378 = vmatpush1.xpose.msra.mxu0 %v313
        %379 = vmatprep.subr.mxu0 %v316
        %380 = vmatpush1.xpose.msra.mxu0 %v315
        %381 = vmatprep.subr.mxu0 %v318
        %382 = vmatpush1.xpose.msra.mxu0 %v317
        %383 = vmatprep.subr.mxu0 %v320
        %384 = vmatpush1.xpose.msra.mxu0 %v319
        %385 = vmatprep.subr.mxu0 %v322
        %386 = vmatpush1.xpose.msra.mxu0 %v321
        %387 = vmatprep.subr.mxu0 %v324
        %388 = vmatpush1.xpose.msra.mxu0 %v323
        %389 = vmatprep.subr.mxu0 %v326
        %390 = vmatpush1.xpose.msra.mxu0 %v325
        %391 = vmatprep.subr.mxu0 %v328
        %392 = vmatpush1.xpose.msra.mxu0 %v327
        %393 = vmatprep.subr.mxu0 %v330
        %394 = vmatpush1.xpose.msra.mxu0 %v329
        %395 = vmatprep.subr.mxu0 %v332
        %396 = vmatpush1.xpose.msra.mxu0 %v331
        %397 = vmatprep.subr.mxu0 %v334
        %398 = vmatpush1.xpose.msra.mxu0 %v333
        %399 = vmatprep.subr.mxu0 %v336
        %400 = vmatpush1.xpose.msra.mxu0 %v335
        %401 = vmatprep.subr.mxu0 %v338
        %402 = vmatpush1.xpose.msra.mxu0 %v337
        %403 = vmatprep.subr.mxu0 %v340
        %404 = vmatpush1.xpose.msra.mxu0 %v339
        %405 = vmatprep.subr.mxu0 %v342
        %406 = vmatpush1.xpose.msra.mxu0 %v341
        %407 = vmatprep.subr.mxu0 %v344
        %408 = vmatpush1.xpose.msra.mxu0 %v343
        %409 = vmatprep.subr.mxu0 %v346
        %410 = vmatpush1.xpose.msra.mxu0 %v345
        %411 = vmatprep.subr.mxu0 %v348
        %412 = vmatpush1.xpose.msra.mxu0 %v347
        %413 = vmatprep.mubr.f32.mxu0 %v284
        %414 = vmatmul.mubr.f32.gmra.mrb[0].mxu0 %v283
        %v415 = vpop.f32.mrb[0].mxu0
        %v416 = vadd.f32 0.0, %v415
        %v417 = vpop.f32.mrb[0].mxu0
        %v418 = vadd.f32 0.0, %v417
        %419 = vdwg.mxu0
        %v420 = vxor.u32 %v416, 2147483648
        %v421 = vmul.f32 %v420, 1.442695
        %v422 = vpow.pop %v421
        %v423 = vadd.f32 %v422, 1.0
        %v424 = vrcp.pop %v423
        %v425 = vmul.f32 1.0, %v424
        %v426 = vmul.f32 %v416, %v425
        %v427 = vmul.f32 %v426, %v418
        %v428 = vld [vmem:[#allocation2] sm:$0xff]
        %v429 = vld [vmem:[#allocation2 + $0x8] sm:$0xff]
        %v430 = vld [vmem:[%s243] sm:$0xff]
        %v431 = vld [vmem:[%s243 + $0x8] sm:$0xff]
        %v432 = vld [vmem:[%s243 + $0x10] sm:$0xff]
        %v433 = vld [vmem:[%s243 + $0x18] sm:$0xff]
        %v434 = vld [vmem:[%s243 + $0x20] sm:$0xff]
        %v435 = vld [vmem:[%s243 + $0x28] sm:$0xff]
        %v436 = vld [vmem:[%s243 + $0x30] sm:$0xff]
        %v437 = vld [vmem:[%s243 + $0x38] sm:$0xff]
        %v438 = vld [vmem:[%s243 + $0x40] sm:$0xff]
        %v439 = vld [vmem:[%s243 + $0x48] sm:$0xff]
        %v440 = vld [vmem:[%s243 + $0x50] sm:$0xff]
        %v441 = vld [vmem:[%s243 + $0x58] sm:$0xff]
        %v442 = vld [vmem:[%s243 + $0x60] sm:$0xff]
        %v443 = vld [vmem:[%s243 + $0x68] sm:$0xff]
        %v444 = vld [vmem:[%s243 + $0x70] sm:$0xff]
        %v445 = vld [vmem:[%s243 + $0x78] sm:$0xff]
        %v446 = vld [vmem:[%s243 + $0x80] sm:$0xff]
        %v447 = vld [vmem:[%s243 + $0x88] sm:$0xff]
        %v448 = vld [vmem:[%s243 + $0x90] sm:$0xff]
        %v449 = vld [vmem:[%s243 + $0x98] sm:$0xff]
        %v450 = vld [vmem:[%s243 + $0xa0] sm:$0xff]
        %v451 = vld [vmem:[%s243 + $0xa8] sm:$0xff]
        %v452 = vld [vmem:[%s243 + $0xb0] sm:$0xff]
        %v453 = vld [vmem:[%s243 + $0xb8] sm:$0xff]
        %v454 = vld [vmem:[%s243 + $0xc0] sm:$0xff]
        %v455 = vld [vmem:[%s243 + $0xc8] sm:$0xff]
        %v456 = vld [vmem:[%s243 + $0xd0] sm:$0xff]
        %v457 = vld [vmem:[%s243 + $0xd8] sm:$0xff]
        %v458 = vld [vmem:[%s243 + $0xe0] sm:$0xff]
        %v459 = vld [vmem:[%s243 + $0xe8] sm:$0xff]
        %v460 = vld [vmem:[%s243 + $0xf0] sm:$0xff]
        %v461 = vld [vmem:[%s243 + $0xf8] sm:$0xff]
        %462 = vmatprep.subr.mxu0 0.0
        %463 = vmatpush1.xpose.msra.mxu0 %v430
        %464 = vmatprep.subr.mxu0 0.0
        %465 = vmatpush1.xpose.msra.mxu0 %v431
        %466 = vmatprep.subr.mxu0 0.0
        %467 = vmatpush1.xpose.msra.mxu0 %v432
        %468 = vmatprep.subr.mxu0 0.0
        %469 = vmatpush1.xpose.msra.mxu0 %v433
        %470 = vmatprep.subr.mxu0 0.0
        %471 = vmatpush1.xpose.msra.mxu0 %v434
        %472 = vmatprep.subr.mxu0 0.0
        %473 = vmatpush1.xpose.msra.mxu0 %v435
        %474 = vmatprep.subr.mxu0 0.0
        %475 = vmatpush1.xpose.msra.mxu0 %v436
        %476 = vmatprep.subr.mxu0 0.0
        %477 = vmatpush1.xpose.msra.mxu0 %v437
        %478 = vmatprep.subr.mxu0 0.0
        %479 = vmatpush1.xpose.msra.mxu0 %v438
        %480 = vmatprep.subr.mxu0 0.0
        %481 = vmatpush1.xpose.msra.mxu0 %v439
        %482 = vmatprep.subr.mxu0 0.0
        %483 = vmatpush1.xpose.msra.mxu0 %v440
        %484 = vmatprep.subr.mxu0 0.0
        %485 = vmatpush1.xpose.msra.mxu0 %v441
        %486 = vmatprep.subr.mxu0 0.0
        %487 = vmatpush1.xpose.msra.mxu0 %v442
        %488 = vmatprep.subr.mxu0 0.0
        %489 = vmatpush1.xpose.msra.mxu0 %v443
        %490 = vmatprep.subr.mxu0 0.0
        %491 = vmatpush1.xpose.msra.mxu0 %v444
        %492 = vmatprep.subr.mxu0 0.0
        %493 = vmatpush1.xpose.msra.mxu0 %v445
        %494 = vmatprep.subr.mxu0 0.0
        %495 = vmatpush1.xpose.msra.mxu0 %v446
        %496 = vmatprep.subr.mxu0 0.0
        %497 = vmatpush1.xpose.msra.mxu0 %v447
        %498 = vmatprep.subr.mxu0 0.0
        %499 = vmatpush1.xpose.msra.mxu0 %v448
        %500 = vmatprep.subr.mxu0 0.0
        %501 = vmatpush1.xpose.msra.mxu0 %v449
        %502 = vmatprep.subr.mxu0 0.0
        %503 = vmatpush1.xpose.msra.mxu0 %v450
        %504 = vmatprep.subr.mxu0 0.0
        %505 = vmatpush1.xpose.msra.mxu0 %v451
        %506 = vmatprep.subr.mxu0 0.0
        %507 = vmatpush1.xpose.msra.mxu0 %v452
        %508 = vmatprep.subr.mxu0 0.0
        %509 = vmatpush1.xpose.msra.mxu0 %v453
        %510 = vmatprep.subr.mxu0 0.0
        %511 = vmatpush1.xpose.msra.mxu0 %v454
        %512 = vmatprep.subr.mxu0 0.0
        %513 = vmatpush1.xpose.msra.mxu0 %v455
        %514 = vmatprep.subr.mxu0 0.0
        %515 = vmatpush1.xpose.msra.mxu0 %v456
        %516 = vmatprep.subr.mxu0 0.0
        %517 = vmatpush1.xpose.msra.mxu0 %v457
        %518 = vmatprep.subr.mxu0 0.0
        %519 = vmatpush1.xpose.msra.mxu0 %v458
        %520 = vmatprep.subr.mxu0 0.0
        %521 = vmatpush1.xpose.msra.mxu0 %v459
        %522 = vmatprep.subr.mxu0 0.0
        %523 = vmatpush1.xpose.msra.mxu0 %v460
        %524 = vmatprep.subr.mxu0 0.0
        %525 = vmatpush1.xpose.msra.mxu0 %v461
        %526 = vmatprep.mubr.f32.mxu0 0.0
        %527 = vmatmul.mubr.f32.gmra.mrb[0].mxu0 %v427
        %v528 = vpop.f32.mrb[0].mxu0
        %v529 = vadd.f32 0.0, %v528
        %v530 = vpop.f32.mrb[0].mxu0
        %v531 = vadd.f32 0.0, %v530
        %532 = vdwg.mxu0
        %v533 = vadd.f32 %v428, %v529
        %v534 = vadd.f32 %v429, %v531
        %535 = vst [vmem:[#allocation2] sm:$0xff] %v533
        %536 = vst [vmem:[#allocation2 + $0x8] sm:$0xff] %v534
        %p537 = scmp.eq.s32.totalorder %s28, 3
        // Predicated region
        $region49: #{tpu_custom_call.1} parent=31 // pred_check
          %p538 = pneg %p537
        $region50: #{tpu_custom_call.1} parent=31 // pred_check_branch
          %540 = sbr.rel (%p538) target = $region52
        $region51: #{tpu_custom_call.1} parent=31 // pred_region
          %v541 = vld [vmem:[#allocation2] sm:$0xff]
          %v542 = vld [vmem:[#allocation2 + $0x8] sm:$0xff]
          %543 = vst [vmem:[%s275] sm:$0xff] %v541
          %544 = vst [vmem:[%s275 + $0x8] sm:$0xff] %v542
        $region52: #{tpu_custom_call.1} parent=31 // pred_fallthru
          _
        %s545 = sand.u32 %s121, 1
        %s546 = scalar_lea.sflag [#allocation5], %s545
        %s547 = sand.u32 %s121, 1
        %s548 = smul.addr %s547, 16
        %s549 = scalar_lea.vmem [#allocation9], %s548
        // Predicated region
        $region53: #{tpu_custom_call.1} parent=31 // pred_check
          %p550 = pneg %p131
        $region54: #{tpu_custom_call.1} parent=31 // pred_check_branch
          %552 = sbr.rel (%p550) target = $region56
        $region55: #{tpu_custom_call.1} parent=31 // pred_region
          %s554 = ssub.s32 256, 256
          %555 = vsyncadd %s546, %s554
          %s556 = smul.addr %s27, 2
          %s557 = smul.addr %s556, 128
          %s558 = scalar_lea.hbm %s3, %s557
          %s560 = sshll.u32 %s549, 4
          %s561 = int_to_ptr.vmem [resolvable:$true] %s560
          %563 = dma.vmem_to_hbm [thread:$0]  %s561, 256, %s558, %s546
        $region56: #{tpu_custom_call.1} parent=31 // pred_fallthru
          _
      $region32: #{tpu_custom_call.1} parent=5 // pred_fallthru
        _
      %p564 = scmp.le.s32.totalorder 2, %s18
      // Predicated region
      $region57: #{tpu_custom_call.1} parent=5 // pred_check
        %p565 = pneg %p564
      $region58: #{tpu_custom_call.1} parent=5 // pred_check_branch
        %567 = sbr.rel (%p565) target = $region60
      $region59: #{tpu_custom_call.1} parent=5 // pred_region
        %s568 = ssub.s32 %s18, 2
        // Predicated region
        $region61: #{tpu_custom_call.1} parent=59 // pred_check
          %p569 = pneg %p137
        $region62: #{tpu_custom_call.1} parent=59 // pred_check_branch
          %571 = sbr.rel (%p569) target = $region64
        $region63: #{tpu_custom_call.1} parent=59 // pred_region
          %s572 = sand.u32 %s122, 1
          %s573 = scalar_lea.sflag [#allocation5], %s572
          %s574 = sand.u32 %s122, 1
          %s575 = smul.addr %s574, 16
          %s576 = scalar_lea.vmem [#allocation9], %s575
          %577 = dma.done %s573, 256
        $region64: #{tpu_custom_call.1} parent=59 // pred_fallthru
          _
      $region60: #{tpu_custom_call.1} parent=5 // pred_fallthru
        _
    $region6: #{tpu_custom_call.1} parent=1 // loop_footer
      %s22 = sadd.s32 1, %s18
    $region7: #{tpu_custom_call.1} parent=1 // loop_footer_branch
      %17 = sbr.rel target = $region3
    $region8: #{tpu_custom_call.1} parent=1 // loop_exit
      _
    %578 = vsyncpa [#allocation4], 1
    %s579 = scalar_lea.sflag [#allocation4], 1
    %580 = vsyncpa %s579, 1
    %581 = vsyncpa [#allocation7], 1
    %s582 = scalar_lea.sflag [#allocation7], 1
    %583 = vsyncpa %s582, 1
    %584 = vsyncpa [#allocation5], 1
    %s585 = scalar_lea.sflag [#allocation5], 1
    %586 = vsyncpa %s585, 1

</llo_original>
